<compile_context>
chip_gen: v7x
topology: tpu7x:2x2x1
jax: 0.10.0
libtpu: 0.0.40
codegen_flags: <defaults>
</compile_context>

<pallas_src>
import functools
from typing import List, Tuple

import jax
import jax.numpy as jnp
from jax.experimental import pallas as pl
from jax.experimental.pallas import tpu as pltpu


_LANE = 128
_SUBLANE = 8


def _round_up(d: int, m: int) -> int:
    return ((d + m - 1) // m) * m


def _apply_act(h, activation: str):
    # act(0) == 0 for every supported activation -> feature padding stays inert.
    if activation == "relu":
        return jnp.maximum(h, 0.0)
    elif activation == "tanh":
        return jnp.tanh(h)
    elif activation == "leaky_relu":
        # identical to where(h>0, h, 0.01*h) for slope < 1, one fewer VPU op
        return jnp.maximum(h, 0.01 * h)
    elif activation == "linear":
        return h  # Identity
    else:
        raise ValueError(f"unsupported activation: {activation}")


# ----------------------------------------------------------------------------
# Fused kernel: the whole MLP in one gridless pallas_call.
#   x_ref:    (batch, in_pad0)          f32, VMEM
#   slab_ref: (total_rows, slab_width)  bf16, VMEM  -- all weights + biases
#   o_ref:    (batch, out_pad_last)     f32, VMEM
# layer_meta: static tuple of (row_off, in_pad, out_pad, activation).
# Per layer the slab holds `in_pad` weight rows followed by 1 bias row, with
# the layer block padded to an 8-row boundary (so all static slices are
# sublane-aligned).
# ----------------------------------------------------------------------------
def _mlp_fused_kernel(x_ref, slab_ref, o_ref, *, layer_meta):
    h = x_ref[...].astype(jnp.float32)                          # (B, in_pad0)
    for (row_off, in_pad, out_pad, act) in layer_meta:
        w = slab_ref[row_off:row_off + in_pad, 0:out_pad]       # bf16 (in_pad, out_pad)
        b = slab_ref[row_off + in_pad:row_off + in_pad + 1,
                     0:out_pad].astype(jnp.float32)             # (1, out_pad)
        # bf16 MXU operands, f32 accumulation; bias/activation stay f32.
        h = jnp.dot(h.astype(jnp.bfloat16), w,
                    preferred_element_type=jnp.float32) + b
        h = _apply_act(h, act)
    o_ref[...] = h.astype(o_ref.dtype)


def mlp_forward_fused(x, slab, layer_meta, out_dim):
    """Full FullyConnectedNetwork forward in a single pallas_call.

    x:          (batch, in_dim) unpadded f32 input.
    slab:       (total_rows, slab_width) bf16 packed parameter slab.
    layer_meta: static tuple of (row_off, in_pad, out_pad, activation).
    out_dim:    true (unpadded) output feature dim.
    """
    batch, in_dim = x.shape
    in_pad0 = layer_meta[0][1]
    out_pad_last = layer_meta[-1][2]

    # Lane-pad the input once (fused by XLA into the surrounding jit graph).
    x_p = jnp.pad(x, ((0, 0), (0, in_pad0 - in_dim))) if in_pad0 != in_dim else x

    kernel = functools.partial(_mlp_fused_kernel, layer_meta=layer_meta)
    vmem = pl.BlockSpec(memory_space=pltpu.MemorySpace.VMEM)

    y_p = pl.pallas_call(
        kernel,
        out_shape=jax.ShapeDtypeStruct((batch, out_pad_last), jnp.float32),
        in_specs=[vmem, vmem],
        out_specs=vmem,
    )(x_p, slab)

    return y_p[:, :out_dim]


# ----------------------------------------------------------------------------
# Parameter construction mirroring FullyConnectedNetwork.__init__:
#   - orthogonal weight init (torch.nn.init.orthogonal_), scaled by w_scale
#     (0.001 when the layer's activation is 'linear', else 1.0)
#   - zero bias
# Weights are stored transposed, (in_dim, out_dim), zero-padded to lane
# multiples of 128, and packed (with their bias row) into one bf16 slab.
# ----------------------------------------------------------------------------
def orthogonal_init(key, rows, cols):
    # Mimics torch orthogonal_: QR of a gaussian, sign-corrected by diag(R).
    flat = jax.random.normal(key, (rows, cols), dtype=jnp.float32)
    if rows < cols:
        flat = flat.T
    q, r = jnp.linalg.qr(flat)
    d = jnp.sign(jnp.diagonal(r))
    q = q * d[None, :]
    if rows < cols:
        q = q.T
    return q[:rows, :cols]


def build_params(key, layers: List[int], activations: List[str],
                 param_dtype=jnp.bfloat16):
    """Returns (slab, layer_meta, raw_layers).

    slab:       (total_rows, slab_width) param_dtype packed weights+biases.
    layer_meta: tuple of (row_off, in_pad, out_pad, activation) static ints/str.
    raw_layers: list of (w_f32 (in,out), b_f32 (out,), activation) for reference.
    """
    assert len(layers) == len(activations) + 1

    raw_layers = []
    dims = []
    for (in_dim, out_dim), act in zip(zip(layers, layers[1:]), activations):
        key, sub = jax.random.split(key)
        w_scale = 0.001 if act == "linear" else 1.0
        # torch Linear weight is (out_dim, in_dim); we store the transpose.
        w_torch = orthogonal_init(sub, out_dim, in_dim) * w_scale
        w = w_torch.T                                    # (in_dim, out_dim)
        b = jnp.zeros((out_dim,), dtype=jnp.float32)     # constant_(bias, 0)
        raw_layers.append((w, b, act))
        dims.append((in_dim, out_dim))

    slab_width = max(_round_up(o, _LANE) for (_i, o) in dims)

    # Row layout: per layer -> in_pad weight rows + 1 bias row, block padded to 8.
    meta: List[Tuple[int, int, int, str]] = []
    row_off = 0
    for (in_dim, out_dim), (_w, _b, act) in zip(dims, raw_layers):
        in_pad = _round_up(in_dim, _LANE)
        out_pad = _round_up(out_dim, _LANE)
        meta.append((row_off, in_pad, out_pad, act))
        row_off += _round_up(in_pad + 1, _SUBLANE)
    total_rows = _round_up(row_off, _SUBLANE)

    slab = jnp.zeros((total_rows, slab_width), dtype=param_dtype)
    for (off, in_pad, out_pad, _act), (w, b, _a), (in_dim, out_dim) in zip(
            meta, raw_layers, dims):
        slab = slab.at[off:off + in_dim, :out_dim].set(w.astype(param_dtype))
        slab = slab.at[off + in_pad, :out_dim].set(b.astype(param_dtype))

    return slab, tuple(meta), raw_layers


# ----------------------------------------------------------------------------
if __name__ == "__main__":
    # Small, forward-implied shapes: batch=8, layers=[32, 64, 64, 16]
    layers = [32, 64, 64, 16]
    activations = ["relu", "relu", "linear"]

    key = jax.random.PRNGKey(0)
    key, xkey = jax.random.split(key)
    x = jax.random.normal(xkey, (8, layers[0]), dtype=jnp.float32)

    slab, layer_meta, raw_layers = build_params(key, layers, activations)

    forward = jax.jit(
        lambda xx: mlp_forward_fused(xx, slab, layer_meta, layers[-1]))
    out = forward(x)
    jax.block_until_ready(out)

    # Reference in plain JAX, emulating the kernel's bf16 MXU operands
    # (f32 accumulation, f32 bias/activation) on the UNPADDED parameters.
    def _bf16(a):
        return a.astype(jnp.bfloat16).astype(jnp.float32)

    ref = x
    for (w, b, act) in raw_layers:
        ref = jnp.dot(_bf16(ref), _bf16(w),
                      preferred_element_type=jnp.float32) + b[None, :]
        if act == "relu":
            ref = jnp.maximum(ref, 0.0)
        elif act == "tanh":
            ref = jnp.tanh(ref)
        elif act == "leaky_relu":
            ref = jnp.maximum(ref, 0.01 * ref)
        # 'linear' -> identity

    assert out.shape == (8, layers[-1])
    assert jnp.allclose(out, ref, atol=1e-4, rtol=1e-3), (
        float(jnp.max(jnp.abs(out - ref))))

    print("KERNEL_OK")
</pallas_src>

<mosaic_0001>
module attributes {stable_mosaic.version = 11 : i64} {
  func.func @_mlp_fused_kernel(%arg0: memref<8x128xf32, #tpu.memory_space<vmem>>, %arg1: memref<408x128xbf16, #tpu.memory_space<vmem>>, %arg2: memref<8x128xf32, #tpu.memory_space<vmem>>) attributes {dimension_semantics = [], scalar_prefetch = 0 : i64, scratch_operands = 0 : i64, tpu.core_type = #tpu.core_type<tc>} {
    %c0 = arith.constant 0 : index
    %c0_0 = arith.constant 0 : index
    %0 = vector.load %arg0[%c0, %c0_0] : memref<8x128xf32, #tpu.memory_space<vmem>>, vector<8x128xf32>
    %c0_1 = arith.constant 0 : index
    %c0_2 = arith.constant 0 : index
    %1 = vector.load %arg1[%c0_1, %c0_2] : memref<408x128xbf16, #tpu.memory_space<vmem>>, vector<128x128xbf16>
    %c128 = arith.constant 128 : index
    %c0_3 = arith.constant 0 : index
    %2 = vector.load %arg1[%c128, %c0_3] : memref<408x128xbf16, #tpu.memory_space<vmem>>, vector<1x128xbf16>
    %3 = arith.extf %2 : vector<1x128xbf16> to vector<1x128xf32>
    %4 = arith.truncf %0 : vector<8x128xf32> to vector<8x128xbf16>
    %cst = arith.constant dense<0.000000e+00> : vector<8x128xf32>
    %5 = tpu.matmul %4, %1, %cst {dimension_numbers = #tpu.dot_dimension_numbers<[1], [0], [0], [1], [0, 0, 1, 1], [], []>} : vector<8x128xbf16>, vector<128x128xbf16>, vector<8x128xf32> -> vector<8x128xf32>
    %6 = vector.broadcast %3 : vector<1x128xf32> to vector<8x128xf32>
    %7 = arith.addf %5, %6 : vector<8x128xf32>
    %cst_4 = arith.constant 0.000000e+00 : f32
    %8 = vector.broadcast %cst_4 : f32 to vector<8x128xf32>
    %9 = arith.maximumf %7, %8 : vector<8x128xf32>
    %c136 = arith.constant 136 : index
    %c0_5 = arith.constant 0 : index
    %10 = vector.load %arg1[%c136, %c0_5] : memref<408x128xbf16, #tpu.memory_space<vmem>>, vector<128x128xbf16>
    %c264 = arith.constant 264 : index
    %c0_6 = arith.constant 0 : index
    %11 = vector.load %arg1[%c264, %c0_6] : memref<408x128xbf16, #tpu.memory_space<vmem>>, vector<1x128xbf16>
    %12 = arith.extf %11 : vector<1x128xbf16> to vector<1x128xf32>
    %13 = arith.truncf %9 : vector<8x128xf32> to vector<8x128xbf16>
    %cst_7 = arith.constant dense<0.000000e+00> : vector<8x128xf32>
    %14 = tpu.matmul %13, %10, %cst_7 {dimension_numbers = #tpu.dot_dimension_numbers<[1], [0], [0], [1], [0, 0, 1, 1], [], []>} : vector<8x128xbf16>, vector<128x128xbf16>, vector<8x128xf32> -> vector<8x128xf32>
    %15 = vector.broadcast %12 : vector<1x128xf32> to vector<8x128xf32>
    %16 = arith.addf %14, %15 : vector<8x128xf32>
    %cst_8 = arith.constant 0.000000e+00 : f32
    %17 = vector.broadcast %cst_8 : f32 to vector<8x128xf32>
    %18 = arith.maximumf %16, %17 : vector<8x128xf32>
    %c272 = arith.constant 272 : index
    %c0_9 = arith.constant 0 : index
    %19 = vector.load %arg1[%c272, %c0_9] : memref<408x128xbf16, #tpu.memory_space<vmem>>, vector<128x128xbf16>
    %c400 = arith.constant 400 : index
    %c0_10 = arith.constant 0 : index
    %20 = vector.load %arg1[%c400, %c0_10] : memref<408x128xbf16, #tpu.memory_space<vmem>>, vector<1x128xbf16>
    %21 = arith.extf %20 : vector<1x128xbf16> to vector<1x128xf32>
    %22 = arith.truncf %18 : vector<8x128xf32> to vector<8x128xbf16>
    %cst_11 = arith.constant dense<0.000000e+00> : vector<8x128xf32>
    %23 = tpu.matmul %22, %19, %cst_11 {dimension_numbers = #tpu.dot_dimension_numbers<[1], [0], [0], [1], [0, 0, 1, 1], [], []>} : vector<8x128xbf16>, vector<128x128xbf16>, vector<8x128xf32> -> vector<8x128xf32>
    %24 = vector.broadcast %21 : vector<1x128xf32> to vector<8x128xf32>
    %25 = arith.addf %23, %24 : vector<8x128xf32>
    %c0_12 = arith.constant 0 : index
    %c0_13 = arith.constant 0 : index
    %26 = vector.load %arg2[%c0_12, %c0_13] : memref<8x128xf32, #tpu.memory_space<vmem>>, vector<8x128xf32>
    tpu.vector_store %arg2[%c0_12, %c0_13], %25 {strides = array<i32>} : memref<8x128xf32, #tpu.memory_space<vmem>>, vector<8x128xf32>,
    return
  }
}

</mosaic_0001>

<llo_original>
// kernel: _lambda_.1
$region0: #{_lambda_.1}
  #allocation0 [shape = 'u32[]', space=smem, size = 0x4, offset = 0x4, fixed_abs, tag = 'smem constant byte address 0x4 - core index']
  #allocation1 [shape = 'u32[144,128]{1,0:T(1,128)}', space=vmem, size = 0x12000, scoped, tag = 'internal scratch']
  %s0 = inlined_call_operand.vmem [shape: f32[8,128], index: 0, kind: input, shape index: {}]
  %s1 = inlined_call_operand.hbm [shape: bf16[408,128], index: 1, kind: input, shape index: {}]
  %s2 = inlined_call_operand.hbm [shape: f32[8,128], index: 2, kind: output, shape index: {}]
  %s3 = sld [smem:[#allocation0]]
  $region22: #{_lambda_.1} parent=0
    _
  %s5 = ssub.s32 1, %s3
  %s6 = scalar_select 0, %s5, %s3
  $region1: #{_lambda_.1} parent=0
    #allocation2 [shape = 'u8[104448]{0}', space=vmem, size = 0x19800, scoped, tag = 'input window, operand 1, single buffered']
    #allocation3 [shape = 's32[1]{0}', space=sflag, size = 0x4, scoped, tag = 'scoped memory for _lambda_.1']
    #allocation4 [shape = 's32[1]{0}', space=sflag, size = 0x4, scoped, tag = 'scoped memory for _lambda_.1']
    #allocation5 [shape = 'u8[4096]{0}', space=vmem, size = 0x1000, scoped, tag = 'output window, operand 0, single buffered']
    %7 = vsyncpa [#allocation3], 0
    %8 = vsyncpa [#allocation4], 0
    // Predicated region
    $region2: #{_lambda_.1} parent=1 // pred_check
      _
    $region3: #{_lambda_.1} parent=1 // pred_check_branch
      %10 = sbr.rel (0) target = $region5
    $region4: #{_lambda_.1} parent=1 // pred_region
      _
    $region5: #{_lambda_.1} parent=1 // pred_fallthru
      _
    // Predicated region
    $region6: #{_lambda_.1} parent=1 // pred_check
      _
    $region7: #{_lambda_.1} parent=1 // pred_check_branch
      %12 = sbr.rel (0) target = $region9
    $region8: #{_lambda_.1} parent=1 // pred_region
      %s14 = ssub.s32 3264, 3264
      %15 = vsyncadd [#allocation3], %s14
      %s16 = sshll.u32 [#allocation2], 4
      %s17 = int_to_ptr.vmem [resolvable:$true] %s16
      %22 = dma.hbm_to_vmem [thread:$0]  %s1, 3264, %s17, [#allocation3], 64, 64, 4
    $region9: #{_lambda_.1} parent=1 // pred_fallthru
      _
    // Predicated region
    $region10: #{_lambda_.1} parent=1 // pred_check
      _
    $region11: #{_lambda_.1} parent=1 // pred_check_branch
      %24 = sbr.rel (0) target = $region13
    $region12: #{_lambda_.1} parent=1 // pred_region
      %25 = dma.done [#allocation3], 3264
    $region13: #{_lambda_.1} parent=1 // pred_fallthru
      _
    %v27 = vld [vmem:[%s0] sm:$0xff]
    %v28 = vld [vmem:[#allocation2] sm:$0xf]
    %v29 = vld [vmem:[#allocation2 + $0x4] sm:$0xf]
    %v30 = vld [vmem:[#allocation2 + $0x8] sm:$0xf]
    %v31 = vld [vmem:[#allocation2 + $0xc] sm:$0xf]
    %v32 = vld [vmem:[#allocation2 + $0x10] sm:$0xf]
    %v33 = vld [vmem:[#allocation2 + $0x14] sm:$0xf]
    %v34 = vld [vmem:[#allocation2 + $0x18] sm:$0xf]
    %v35 = vld [vmem:[#allocation2 + $0x1c] sm:$0xf]
    %v36 = vld [vmem:[#allocation2 + $0x20] sm:$0xf]
    %v37 = vld [vmem:[#allocation2 + $0x24] sm:$0xf]
    %v38 = vld [vmem:[#allocation2 + $0x28] sm:$0xf]
    %v39 = vld [vmem:[#allocation2 + $0x2c] sm:$0xf]
    %v40 = vld [vmem:[#allocation2 + $0x30] sm:$0xf]
    %v41 = vld [vmem:[#allocation2 + $0x34] sm:$0xf]
    %v42 = vld [vmem:[#allocation2 + $0x38] sm:$0xf]
    %v43 = vld [vmem:[#allocation2 + $0x3c] sm:$0xf]
    %v44 = vld [vmem:[#allocation2 + $0x40] sm:$0x1]
    %v45 = vunpack.c.l.bf16 %v44
    %v46 = vpack.c.bf16 %v27, %v27
    %v47 = vlaneseq
    %v48 = vshrl.u32 %v47, 7
    %v49 = vsub.s32 0, %v48
    %v50 = vrot.slane %v45, %v49
    %v67 = vunpack.c.l.b16 %v28
    %v68 = vunpack.c.l.b16 %v29
    %v69 = vunpack.c.l.b16 %v30
    %v70 = vunpack.c.l.b16 %v31
    %v71 = vunpack.c.l.b16 %v32
    %v72 = vunpack.c.l.b16 %v33
    %v73 = vunpack.c.l.b16 %v34
    %v74 = vunpack.c.l.b16 %v35
    %v75 = vunpack.c.l.b16 %v36
    %v76 = vunpack.c.l.b16 %v37
    %v77 = vunpack.c.l.b16 %v38
    %v78 = vunpack.c.l.b16 %v39
    %v79 = vunpack.c.l.b16 %v40
    %v80 = vunpack.c.l.b16 %v41
    %v81 = vunpack.c.l.b16 %v42
    %v82 = vunpack.c.l.b16 %v43
    %v83 = vpack.c.b16 %v68, %v67
    %v84 = vpack.c.b16 %v70, %v69
    %v85 = vpack.c.b16 %v72, %v71
    %v86 = vpack.c.b16 %v74, %v73
    %v87 = vpack.c.b16 %v76, %v75
    %v88 = vpack.c.b16 %v78, %v77
    %v89 = vpack.c.b16 %v80, %v79
    %v90 = vpack.c.b16 %v82, %v81
    %99 = vmatprep.subr.bf16.mxu0 0
    %100 = vmatpush1.bf16.msra.mxu0 %v83
    %101 = vmatprep.subr.bf16.mxu0 0
    %102 = vmatpush1.bf16.msra.mxu0 %v84
    %103 = vmatprep.subr.bf16.mxu0 0
    %104 = vmatpush1.bf16.msra.mxu0 %v85
    %105 = vmatprep.subr.bf16.mxu0 0
    %106 = vmatpush1.bf16.msra.mxu0 %v86
    %107 = vmatprep.subr.bf16.mxu0 0
    %108 = vmatpush1.bf16.msra.mxu0 %v87
    %109 = vmatprep.subr.bf16.mxu0 0
    %110 = vmatpush1.bf16.msra.mxu0 %v88
    %111 = vmatprep.subr.bf16.mxu0 0
    %112 = vmatpush1.bf16.msra.mxu0 %v89
    %113 = vmatprep.subr.bf16.mxu0 0
    %114 = vmatpush1.bf16.msra.mxu0 %v90
    %115 = vmatprep.subr.bf16.mxu0 0
    %116 = vmatpush1.bf16.msra.mxu0 0
    %117 = vmatprep.subr.bf16.mxu0 0
    %118 = vmatpush1.bf16.msra.mxu0 0
    %119 = vmatprep.subr.bf16.mxu0 0
    %120 = vmatpush1.bf16.msra.mxu0 0
    %121 = vmatprep.subr.bf16.mxu0 0
    %122 = vmatpush1.bf16.msra.mxu0 0
    %123 = vmatprep.subr.bf16.mxu0 0
    %124 = vmatpush1.bf16.msra.mxu0 0
    %125 = vmatprep.subr.bf16.mxu0 0
    %126 = vmatpush1.bf16.msra.mxu0 0
    %127 = vmatprep.subr.bf16.mxu0 0
    %128 = vmatpush1.bf16.msra.mxu0 0
    %129 = vmatprep.subr.bf16.mxu0 0
    %130 = vmatpush1.bf16.msra.mxu0 0
    %131 = vmatprep.mubr.bf16.mxu0 0
    %132 = vmatmul.mubr.bf16.gmra.mrb[0].mxu0 %v46
    %v133 = vpop.f32.mrb[0].mxu0
    %v134 = vadd.f32 %v50, %v133
    %v135 = vpop.f32.mrb[0].mxu0
    %v136 = vpop.f32.mrb[0].mxu0
    %v137 = vpop.f32.mrb[0].mxu0
    %138 = vdwg.mxu0
    %v139 = vmax.f32 %v134, 0.0
    %v140 = vld [vmem:[#allocation2 + $0x44] sm:$0xf]
    %v141 = vld [vmem:[#allocation2 + $0x48] sm:$0xf]
    %v142 = vld [vmem:[#allocation2 + $0x4c] sm:$0xf]
    %v143 = vld [vmem:[#allocation2 + $0x50] sm:$0xf]
    %v144 = vld [vmem:[#allocation2 + $0x54] sm:$0xf]
    %v145 = vld [vmem:[#allocation2 + $0x58] sm:$0xf]
    %v146 = vld [vmem:[#allocation2 + $0x5c] sm:$0xf]
    %v147 = vld [vmem:[#allocation2 + $0x60] sm:$0xf]
    %v148 = vld [vmem:[#allocation2 + $0x64] sm:$0xf]
    %v149 = vld [vmem:[#allocation2 + $0x68] sm:$0xf]
    %v150 = vld [vmem:[#allocation2 + $0x6c] sm:$0xf]
    %v151 = vld [vmem:[#allocation2 + $0x70] sm:$0xf]
    %v152 = vld [vmem:[#allocation2 + $0x74] sm:$0xf]
    %v153 = vld [vmem:[#allocation2 + $0x78] sm:$0xf]
    %v154 = vld [vmem:[#allocation2 + $0x7c] sm:$0xf]
    %v155 = vld [vmem:[#allocation2 + $0x80] sm:$0xf]
    %v156 = vld [vmem:[#allocation2 + $0x84] sm:$0x1]
    %v157 = vunpack.c.l.bf16 %v156
    %v158 = vpack.c.bf16 %v139, %v139
    %v159 = vlaneseq
    %v160 = vshrl.u32 %v159, 7
    %v161 = vsub.s32 0, %v160
    %v162 = vrot.slane %v157, %v161
    %v179 = vunpack.c.l.b16 %v140
    %v180 = vunpack.c.l.b16 %v141
    %v181 = vunpack.c.l.b16 %v142
    %v182 = vunpack.c.l.b16 %v143
    %v183 = vunpack.c.l.b16 %v144
    %v184 = vunpack.c.l.b16 %v145
    %v185 = vunpack.c.l.b16 %v146
    %v186 = vunpack.c.l.b16 %v147
    %v187 = vunpack.c.l.b16 %v148
    %v188 = vunpack.c.l.b16 %v149
    %v189 = vunpack.c.l.b16 %v150
    %v190 = vunpack.c.l.b16 %v151
    %v191 = vunpack.c.l.b16 %v152
    %v192 = vunpack.c.l.b16 %v153
    %v193 = vunpack.c.l.b16 %v154
    %v194 = vunpack.c.l.b16 %v155
    %v195 = vpack.c.b16 %v180, %v179
    %v196 = vpack.c.b16 %v182, %v181
    %v197 = vpack.c.b16 %v184, %v183
    %v198 = vpack.c.b16 %v186, %v185
    %v199 = vpack.c.b16 %v188, %v187
    %v200 = vpack.c.b16 %v190, %v189
    %v201 = vpack.c.b16 %v192, %v191
    %v202 = vpack.c.b16 %v194, %v193
    %211 = vmatprep.subr.bf16.mxu0 0
    %212 = vmatpush1.bf16.msra.mxu0 %v195
    %213 = vmatprep.subr.bf16.mxu0 0
    %214 = vmatpush1.bf16.msra.mxu0 %v196
    %215 = vmatprep.subr.bf16.mxu0 0
    %216 = vmatpush1.bf16.msra.mxu0 %v197
    %217 = vmatprep.subr.bf16.mxu0 0
    %218 = vmatpush1.bf16.msra.mxu0 %v198
    %219 = vmatprep.subr.bf16.mxu0 0
    %220 = vmatpush1.bf16.msra.mxu0 %v199
    %221 = vmatprep.subr.bf16.mxu0 0
    %222 = vmatpush1.bf16.msra.mxu0 %v200
    %223 = vmatprep.subr.bf16.mxu0 0
    %224 = vmatpush1.bf16.msra.mxu0 %v201
    %225 = vmatprep.subr.bf16.mxu0 0
    %226 = vmatpush1.bf16.msra.mxu0 %v202
    %227 = vmatprep.subr.bf16.mxu0 0
    %228 = vmatpush1.bf16.msra.mxu0 0
    %229 = vmatprep.subr.bf16.mxu0 0
    %230 = vmatpush1.bf16.msra.mxu0 0
    %231 = vmatprep.subr.bf16.mxu0 0
    %232 = vmatpush1.bf16.msra.mxu0 0
    %233 = vmatprep.subr.bf16.mxu0 0
    %234 = vmatpush1.bf16.msra.mxu0 0
    %235 = vmatprep.subr.bf16.mxu0 0
    %236 = vmatpush1.bf16.msra.mxu0 0
    %237 = vmatprep.subr.bf16.mxu0 0
    %238 = vmatpush1.bf16.msra.mxu0 0
    %239 = vmatprep.subr.bf16.mxu0 0
    %240 = vmatpush1.bf16.msra.mxu0 0
    %241 = vmatprep.subr.bf16.mxu0 0
    %242 = vmatpush1.bf16.msra.mxu0 0
    %243 = vmatprep.mubr.bf16.mxu0 0
    %244 = vmatmul.mubr.bf16.gmra.mrb[0].mxu0 %v158
    %v245 = vpop.f32.mrb[0].mxu0
    %v246 = vadd.f32 %v162, %v245
    %v247 = vpop.f32.mrb[0].mxu0
    %v248 = vpop.f32.mrb[0].mxu0
    %v249 = vpop.f32.mrb[0].mxu0
    %250 = vdwg.mxu0
    %v251 = vmax.f32 %v246, 0.0
    %v252 = vld [vmem:[#allocation2 + $0x88] sm:$0xf]
    %v253 = vld [vmem:[#allocation2 + $0x8c] sm:$0xf]
    %v254 = vld [vmem:[#allocation2 + $0x90] sm:$0xf]
    %v255 = vld [vmem:[#allocation2 + $0x94] sm:$0xf]
    %v256 = vld [vmem:[#allocation2 + $0x98] sm:$0xf]
    %v257 = vld [vmem:[#allocation2 + $0x9c] sm:$0xf]
    %v258 = vld [vmem:[#allocation2 + $0xa0] sm:$0xf]
    %v259 = vld [vmem:[#allocation2 + $0xa4] sm:$0xf]
    %v260 = vld [vmem:[#allocation2 + $0xa8] sm:$0xf]
    %v261 = vld [vmem:[#allocation2 + $0xac] sm:$0xf]
    %v262 = vld [vmem:[#allocation2 + $0xb0] sm:$0xf]
    %v263 = vld [vmem:[#allocation2 + $0xb4] sm:$0xf]
    %v264 = vld [vmem:[#allocation2 + $0xb8] sm:$0xf]
    %v265 = vld [vmem:[#allocation2 + $0xbc] sm:$0xf]
    %v266 = vld [vmem:[#allocation2 + $0xc0] sm:$0xf]
    %v267 = vld [vmem:[#allocation2 + $0xc4] sm:$0xf]
    %v268 = vld [vmem:[#allocation2 + $0xc8] sm:$0x1]
    %v269 = vunpack.c.l.bf16 %v268
    %v270 = vpack.c.bf16 %v251, %v251
    %v271 = vlaneseq
    %v272 = vshrl.u32 %v271, 7
    %v273 = vsub.s32 0, %v272
    %v274 = vrot.slane %v269, %v273
    %v291 = vunpack.c.l.b16 %v252
    %v292 = vunpack.c.l.b16 %v253
    %v293 = vunpack.c.l.b16 %v254
    %v294 = vunpack.c.l.b16 %v255
    %v295 = vunpack.c.l.b16 %v256
    %v296 = vunpack.c.l.b16 %v257
    %v297 = vunpack.c.l.b16 %v258
    %v298 = vunpack.c.l.b16 %v259
    %v299 = vunpack.c.l.b16 %v260
    %v300 = vunpack.c.l.b16 %v261
    %v301 = vunpack.c.l.b16 %v262
    %v302 = vunpack.c.l.b16 %v263
    %v303 = vunpack.c.l.b16 %v264
    %v304 = vunpack.c.l.b16 %v265
    %v305 = vunpack.c.l.b16 %v266
    %v306 = vunpack.c.l.b16 %v267
    %v307 = vpack.c.b16 %v292, %v291
    %v308 = vpack.c.b16 %v294, %v293
    %v309 = vpack.c.b16 %v296, %v295
    %v310 = vpack.c.b16 %v298, %v297
    %v311 = vpack.c.b16 %v300, %v299
    %v312 = vpack.c.b16 %v302, %v301
    %v313 = vpack.c.b16 %v304, %v303
    %v314 = vpack.c.b16 %v306, %v305
    %323 = vmatprep.subr.bf16.mxu0 0
    %324 = vmatpush1.bf16.msra.mxu0 %v307
    %325 = vmatprep.subr.bf16.mxu0 0
    %326 = vmatpush1.bf16.msra.mxu0 %v308
    %327 = vmatprep.subr.bf16.mxu0 0
    %328 = vmatpush1.bf16.msra.mxu0 %v309
    %329 = vmatprep.subr.bf16.mxu0 0
    %330 = vmatpush1.bf16.msra.mxu0 %v310
    %331 = vmatprep.subr.bf16.mxu0 0
    %332 = vmatpush1.bf16.msra.mxu0 %v311
    %333 = vmatprep.subr.bf16.mxu0 0
    %334 = vmatpush1.bf16.msra.mxu0 %v312
    %335 = vmatprep.subr.bf16.mxu0 0
    %336 = vmatpush1.bf16.msra.mxu0 %v313
    %337 = vmatprep.subr.bf16.mxu0 0
    %338 = vmatpush1.bf16.msra.mxu0 %v314
    %339 = vmatprep.subr.bf16.mxu0 0
    %340 = vmatpush1.bf16.msra.mxu0 0
    %341 = vmatprep.subr.bf16.mxu0 0
    %342 = vmatpush1.bf16.msra.mxu0 0
    %343 = vmatprep.subr.bf16.mxu0 0
    %344 = vmatpush1.bf16.msra.mxu0 0
    %345 = vmatprep.subr.bf16.mxu0 0
    %346 = vmatpush1.bf16.msra.mxu0 0
    %347 = vmatprep.subr.bf16.mxu0 0
    %348 = vmatpush1.bf16.msra.mxu0 0
    %349 = vmatprep.subr.bf16.mxu0 0
    %350 = vmatpush1.bf16.msra.mxu0 0
    %351 = vmatprep.subr.bf16.mxu0 0
    %352 = vmatpush1.bf16.msra.mxu0 0
    %353 = vmatprep.subr.bf16.mxu0 0
    %354 = vmatpush1.bf16.msra.mxu0 0
    %355 = vmatprep.mubr.bf16.mxu0 0
    %356 = vmatmul.mubr.bf16.gmra.mrb[0].mxu0 %v270
    %v357 = vpop.f32.mrb[0].mxu0
    %v358 = vadd.f32 %v274, %v357
    %v359 = vpop.f32.mrb[0].mxu0
    %v360 = vpop.f32.mrb[0].mxu0
    %v361 = vpop.f32.mrb[0].mxu0
    %362 = vdwg.mxu0
    %363 = vst [vmem:[#allocation5] sm:$0xff] %v358
    // Predicated region
    $region14: #{_lambda_.1} parent=1 // pred_check
      _
    $region15: #{_lambda_.1} parent=1 // pred_check_branch
      %365 = sbr.rel (0) target = $region17
    $region16: #{_lambda_.1} parent=1 // pred_region
      %s367 = ssub.s32 128, 128
      %368 = vsyncadd [#allocation4], %s367
      %s370 = sshll.u32 [#allocation5], 4
      %s371 = int_to_ptr.vmem [resolvable:$true] %s370
      %373 = dma.vmem_to_hbm [thread:$0]  %s371, 128, %s2, [#allocation4]
    $region17: #{_lambda_.1} parent=1 // pred_fallthru
      _
    // Predicated region
    $region18: #{_lambda_.1} parent=1 // pred_check
      _
    $region19: #{_lambda_.1} parent=1 // pred_check_branch
      %375 = sbr.rel (0) target = $region21
    $region20: #{_lambda_.1} parent=1 // pred_region
      %376 = dma.done [#allocation4], 128
    $region21: #{_lambda_.1} parent=1 // pred_fallthru
      _
    %377 = vsyncpa [#allocation3], 1
    %378 = vsyncpa [#allocation4], 1

</llo_original>
